<compile_context>
chip_gen: v7x
topology: tpu7x:2x2x1
jax: 0.10.0
libtpu: 0.0.40
codegen_flags: <defaults>
</compile_context>

<pallas_src>
import jax
import jax.numpy as jnp
from jax import lax
from jax.experimental import pallas as pl
from jax.experimental.pallas import tpu as pltpu


def _round_up(x, m):
    return (x + m - 1) // m * m


def _vmem_capacity_bytes():
    """Physical VMEM capacity of the current TPU generation (fallback 128 MiB)."""
    try:
        info = pltpu.get_tpu_info()
        cap = int(getattr(info, "vmem_capacity_bytes", 0))
        if cap > 0:
            return cap
    except Exception:
        pass
    return 128 * 1024 * 1024


# -----------------------------------------------------------------------------
# Pallas kernel: fused Linear (x @ W + b) + log_softmax over the vocab axis.
# -----------------------------------------------------------------------------
def _ctc_lo_logsoftmax_kernel(x_ref, w_ref, b_ref, o_ref):
    # x_ref: (tm, D) f32 (cast to bf16 here -> native MXU path, no extra HBM
    # convert pass in the wrapper), w_ref: (D, Vp) bf16, b_ref: (1, Vp) f32,
    # o_ref: (tm, Vp) f32.  Matmul accumulates in f32; softmax math in f32.
    x_bf16 = x_ref[...].astype(jnp.bfloat16)
    logits = jnp.dot(x_bf16, w_ref[...],
                     preferred_element_type=jnp.float32) + b_ref[...]
    m = jnp.max(logits, axis=-1, keepdims=True)
    z = logits - m
    lse = jnp.log(jnp.sum(jnp.exp(z), axis=-1, keepdims=True))
    o_ref[...] = (z - lse).astype(o_ref.dtype)


def _pick_row_tile(M, D, Vp, tm_max, budget, *, in_bytes=4, out_bytes=4):
    """Largest row tile (multiple of 128, <= tm_max) whose double-buffered
    input/output tiles plus the single-buffered resident weight & bias fit
    the given VMEM budget."""
    tm = min(tm_max, _round_up(M, 128))
    tm = max(128, _round_up(tm, 128))

    def need(t):
        # 2x input tile + 2x output tile (double-buffered) + single-buffered
        # bf16 weight + f32 bias.
        return (2 * t * D * in_bytes + 2 * t * Vp * out_bytes
                + D * Vp * 2 + Vp * 4)

    while tm > 128 and need(tm) > budget:
        tm -= 128
    if need(tm) > budget:
        # TODO(synk): fall back to a vocab-tiled online-LSE kernel here.
        raise ValueError(
            f"ctc_lo_log_softmax: D={D}, Vp={Vp} needs {need(tm)} bytes of VMEM "
            f"even at tm=128, exceeding the budget of {budget} bytes on this "
            f"TPU generation; a vocab-tiled variant is required.")
    return tm, need(tm)


def ctc_lo_log_softmax(hs_pad, weight, bias):
    """ys_hat = log_softmax(hs_pad @ weight + bias) computed in Pallas.

    hs_pad: (B, T, D)
    weight: (D, V)   (torch Linear weight transposed)
    bias:   (V,)
    returns (B, T, V) f32 log-probabilities.
    """
    B, T, D = hs_pad.shape
    V = weight.shape[1]
    M = B * T

    Vp = _round_up(V, 128)                      # lane-dense output last dim

    cap = _vmem_capacity_bytes()
    budget = int(cap * 0.75)
    # 512-row tiles on 128 MiB parts (v5e/v6e); 256 cap on 64 MiB parts (v7x).
    tm_max = 512 if cap >= (96 << 20) else 256
    tm, vmem_needed = _pick_row_tile(M, D, Vp, tm_max, budget)
    Mp = _round_up(M, tm)                       # pad rows instead of asserting

    # Activations stay f32 (cast to bf16 inside the kernel); weights bf16.
    x = hs_pad.reshape(M, D).astype(jnp.float32)
    if Mp != M:
        x = jnp.pad(x, ((0, Mp - M), (0, 0)))
    w = weight.astype(jnp.bfloat16)
    b = bias.astype(jnp.float32)
    if Vp != V:
        w = jnp.pad(w, ((0, 0), (0, Vp - V)))
        # Padded vocab columns get a huge negative bias so they vanish in the
        # softmax normalization (logits = 0 @ W + (-1e9)).
        b = jnp.pad(b, (0, Vp - V), constant_values=-1e9)
    b2 = b.reshape(1, Vp)

    grid = (Mp // tm,)
    # Never request more VMEM than the chip has, minus headroom for internal
    # scratch (56 MiB effective cap on v7x, 120 MiB on v5e/v6e).
    vmem_limit = int(max(32 << 20, min(vmem_needed + (4 << 20), cap - (8 << 20))))

    cost = pl.CostEstimate(
        flops=2 * Mp * D * Vp,
        transcendentals=Mp * Vp,
        bytes_accessed=Mp * D * 4 + D * Vp * 2 + Vp * 4 + Mp * Vp * 4,
    )

    out = pl.pallas_call(
        _ctc_lo_logsoftmax_kernel,
        out_shape=jax.ShapeDtypeStruct((Mp, Vp), jnp.float32),
        grid_spec=pltpu.PrefetchScalarGridSpec(
            num_scalar_prefetch=0,
            grid=grid,
            in_specs=[
                # Activation row tile: default double-buffering.
                pl.BlockSpec((tm, D), lambda i: (i, 0)),
                # Grid-invariant weight & bias: single-buffer (no point
                # double-buffering a block whose index never changes).
                pl.BlockSpec((D, Vp), lambda i: (0, 0),
                             pipeline_mode=pl.Buffered(1)),
                pl.BlockSpec((1, Vp), lambda i: (0, 0),
                             pipeline_mode=pl.Buffered(1)),
            ],
            out_specs=pl.BlockSpec((tm, Vp), lambda i: (i, 0)),
        ),
        compiler_params=pltpu.CompilerParams(
            dimension_semantics=("parallel",),
            vmem_limit_bytes=vmem_limit,
        ),
        cost_estimate=cost,
    )(x, w, b2)

    return out[:M, :V].reshape(B, T, V)


# -----------------------------------------------------------------------------
# CTC loss (sum reduction, zero_infinity=True), matching torch.nn.CTCLoss.
# Plain-JAX dynamic program (alpha recursion in log space).  Takes the (B,T,V)
# log-probs directly -- no full (B,T,V)->(T,B,V) transpose; only the tiny
# gathered (B,T,S) emission table is transposed for the time scan.
# -----------------------------------------------------------------------------
def ctc_loss_sum(log_probs_btv, targets, input_lengths, target_lengths,
                 blank=0, zero_infinity=True):
    B, T, V = log_probs_btv.shape
    Lmax = targets.shape[1]
    S = 2 * Lmax + 1
    neg_inf = -jnp.inf

    targets = targets.astype(jnp.int32)
    input_lengths = input_lengths.astype(jnp.int32)
    target_lengths = target_lengths.astype(jnp.int32)

    # Extended label sequence: blank, y1, blank, y2, ..., blank  -> (B, S)
    ext = jnp.full((B, S), blank, dtype=jnp.int32)
    ext = ext.at[:, 1::2].set(targets)
    ext = jnp.clip(ext, 0, V - 1)          # guard against padded label ids

    # Skip (s-2 -> s) allowed only for non-blank positions whose label differs
    # from the label two slots back.
    idx_s = jnp.arange(S)
    ext_m2 = jnp.concatenate(
        [jnp.full((B, 2), -1, jnp.int32), ext[:, :-2]], axis=1)
    allow_skip = (idx_s[None, :] % 2 == 1) & (ext != ext_m2) & (idx_s[None, :] >= 2)

    # Emission log-probs of extended labels, gathered from (B, T, V): (B, T, S)
    # TODO(synk): emit this gathered (rows, S) table as a second Pallas kernel
    # output (scalar-prefetched ext labels) to avoid re-reading (B,T,V) here.
    lp_bts = jnp.take_along_axis(
        log_probs_btv, jnp.broadcast_to(ext[:, None, :], (B, T, S)), axis=2)
    lp = jnp.transpose(lp_bts, (1, 0, 2))   # (T, B, S): small, scan over time

    has_input = input_lengths > 0

    # alpha at t = 0, pre-padded with 2 leading -inf columns -> static slices
    # in the scan body instead of per-step concatenates.
    alpha_pad0 = jnp.full((B, S + 2), neg_inf, dtype=jnp.float32)
    alpha_pad0 = alpha_pad0.at[:, 2].set(
        jnp.where(has_input, lp[0, :, 0], neg_inf))
    alpha_pad0 = alpha_pad0.at[:, 3].set(
        jnp.where(has_input & (target_lengths > 0), lp[0, :, 1], neg_inf))

    pad2 = jnp.full((B, 2), neg_inf, dtype=jnp.float32)  # hoisted constant

    def step(alpha_pad, t):
        a = alpha_pad[:, 2:]                                   # alpha[s]
        a1 = alpha_pad[:, 1:-1]                                # alpha[s-1]
        a2 = jnp.where(allow_skip, alpha_pad[:, :-2], neg_inf)  # alpha[s-2]
        new = jnp.logaddexp(jnp.logaddexp(a, a1), a2) + lp[t]
        # Freeze alpha for utterances whose input has already ended.
        new = jnp.where((t >= input_lengths)[:, None], a, new)
        return jnp.concatenate([pad2, new], axis=1), None

    alpha_pad, _ = lax.scan(step, alpha_pad0, jnp.arange(1, T))
    alpha = alpha_pad[:, 2:]

    # log p(target | input) = logsumexp(alpha[2L], alpha[2L-1]) at t = T_b - 1
    last = 2 * target_lengths
    a_last = jnp.take_along_axis(alpha, last[:, None], axis=1)[:, 0]
    a_prev = jnp.take_along_axis(alpha, jnp.maximum(last - 1, 0)[:, None],
                                 axis=1)[:, 0]
    a_prev = jnp.where(target_lengths > 0, a_prev, neg_inf)
    loss = -jnp.logaddexp(a_last, a_prev)
    if zero_infinity:
        loss = jnp.where(jnp.isfinite(loss), loss, 0.0)
    return jnp.sum(loss)


# -----------------------------------------------------------------------------
# CTC module forward (dropout_rate=0.0, reduce=True, blank_id=0).
# -----------------------------------------------------------------------------
def ctc_forward(hs_pad, hlens, ys_pad, ys_lens, weight, bias, blank_id=0):
    # ys_hat = ctc_lo(dropout(hs_pad)); dropout p=0.0 -> identity.
    ys_hat = ctc_lo_log_softmax(hs_pad, weight, bias)        # (B, T, V) log-probs
    loss = ctc_loss_sum(ys_hat, ys_pad, hlens, ys_lens, blank=blank_id)
    loss = loss / hs_pad.shape[0]                            # divide by B
    return loss, ys_hat


if __name__ == "__main__":
    # Small shapes consistent with the module's forward.
    B, T, D, V, Lmax = 2, 8, 32, 16, 4   # eprojs=32, odim=16

    key = jax.random.PRNGKey(0)
    k_h, k_w, k_b, k_y = jax.random.split(key, 4)

    hs_pad = jax.random.normal(k_h, (B, T, D), dtype=jnp.float32)
    hlens = jnp.array([T, T - 2], dtype=jnp.int32)

    ys_pad = jax.random.randint(k_y, (B, Lmax), 1, V, dtype=jnp.int32)
    ys_lens = jnp.array([4, 3], dtype=jnp.int32)

    # Deterministic Linear(eprojs, odim) params (torch-style uniform init).
    bound = 1.0 / jnp.sqrt(jnp.float32(D))
    weight = jax.random.uniform(k_w, (D, V), jnp.float32, -bound, bound)
    bias = jax.random.uniform(k_b, (V,), jnp.float32, -bound, bound)

    loss, ys_hat = ctc_forward(hs_pad, hlens, ys_pad, ys_lens, weight, bias)
    loss = jax.block_until_ready(loss)
    ys_hat = jax.block_until_ready(ys_hat)

    # Sanity: log-prob rows must exponentiate-sum to 1 and loss must be finite.
    assert ys_hat.shape == (B, T, V)
    assert bool(jnp.all(jnp.abs(jnp.sum(jnp.exp(ys_hat), axis=-1) - 1.0) < 1e-4))
    assert bool(jnp.isfinite(loss))
    print("KERNEL_OK")
</pallas_src>

<mosaic_0001>
module attributes {stable_mosaic.version = 11 : i64} {
  func.func @_ctc_lo_logsoftmax_kernel(%arg0: i32, %arg1: memref<128x32xf32, #tpu.memory_space<vmem>>, %arg2: memref<32x128xbf16, #tpu.memory_space<vmem>>, %arg3: memref<1x128xf32, #tpu.memory_space<vmem>>, %arg4: memref<128x128xf32, #tpu.memory_space<vmem>>) attributes {dimension_semantics = [#tpu.dimension_semantics<parallel>], iteration_bounds = array<i64: 1>, scalar_prefetch = 0 : i64, scratch_operands = 0 : i64, tpu.core_type = #tpu.core_type<tc>, window_params = [{transform_indices = @transform_0, window_bounds = array<i64: 128, 32>}, {pipeline_mode = #tpu.pipeline_mode<synchronous>, transform_indices = @transform_1, window_bounds = array<i64: 32, 128>}, {pipeline_mode = #tpu.pipeline_mode<synchronous>, transform_indices = @transform_2, window_bounds = array<i64: 1, 128>}, {transform_indices = @transform_3, window_bounds = array<i64: 128, 128>}]} {
    %c0 = arith.constant 0 : index
    %c0_0 = arith.constant 0 : index
    %0 = vector.load %arg1[%c0, %c0_0] : memref<128x32xf32, #tpu.memory_space<vmem>>, vector<128x32xf32>
    %1 = arith.truncf %0 : vector<128x32xf32> to vector<128x32xbf16>
    %c0_1 = arith.constant 0 : index
    %c0_2 = arith.constant 0 : index
    %2 = vector.load %arg2[%c0_1, %c0_2] : memref<32x128xbf16, #tpu.memory_space<vmem>>, vector<32x128xbf16>
    %cst = arith.constant dense<0.000000e+00> : vector<128x128xf32>
    %3 = tpu.matmul %1, %2, %cst {dimension_numbers = #tpu.dot_dimension_numbers<[1], [0], [0], [1], [0, 0, 1, 1], [], []>} : vector<128x32xbf16>, vector<32x128xbf16>, vector<128x128xf32> -> vector<128x128xf32>
    %c0_3 = arith.constant 0 : index
    %c0_4 = arith.constant 0 : index
    %4 = vector.load %arg3[%c0_3, %c0_4] : memref<1x128xf32, #tpu.memory_space<vmem>>, vector<1x128xf32>
    %5 = vector.broadcast %4 : vector<1x128xf32> to vector<128x128xf32>
    %6 = arith.addf %3, %5 : vector<128x128xf32>
    %cst_5 = arith.constant dense<0xFF800000> : vector<128xf32>
    %7 = vector.multi_reduction <maximumf>, %6, %cst_5 [1] : vector<128x128xf32> to vector<128xf32>
    %8 = vector.shape_cast %7 : vector<128xf32> to vector<128x1xf32>
    %9 = vector.broadcast %8 : vector<128x1xf32> to vector<128x128xf32>
    %10 = arith.subf %6, %9 : vector<128x128xf32>
    %11 = math.exp %10 : vector<128x128xf32>
    %cst_6 = arith.constant dense<0.000000e+00> : vector<128xf32>
    %12 = vector.multi_reduction <add>, %11, %cst_6 [1] : vector<128x128xf32> to vector<128xf32>
    %13 = vector.shape_cast %12 : vector<128xf32> to vector<128x1xf32>
    %14 = math.log %13 : vector<128x1xf32>
    %15 = vector.broadcast %14 : vector<128x1xf32> to vector<128x128xf32>
    %16 = arith.subf %10, %15 : vector<128x128xf32>
    %c0_7 = arith.constant 0 : index
    %c0_8 = arith.constant 0 : index
    %17 = vector.load %arg4[%c0_7, %c0_8] : memref<128x128xf32, #tpu.memory_space<vmem>>, vector<128x128xf32>
    tpu.vector_store %arg4[%c0_7, %c0_8], %16 {strides = array<i32>} : memref<128x128xf32, #tpu.memory_space<vmem>>, vector<128x128xf32>,
    return
  }
  func.func @transform_0(%arg0: i32) -> (i32, i32) {
    %c0_i32 = arith.constant 0 : i32
    %c0_i32_0 = arith.constant 0 : i32
    return %arg0, %c0_i32 : i32, i32
  }
  func.func @transform_1(%arg0: i32) -> (i32, i32) {
    %c0_i32 = arith.constant 0 : i32
    %c0_i32_0 = arith.constant 0 : i32
    %c0_i32_1 = arith.constant 0 : i32
    return %c0_i32, %c0_i32_0 : i32, i32
  }
  func.func @transform_2(%arg0: i32) -> (i32, i32) {
    %c0_i32 = arith.constant 0 : i32
    %c0_i32_0 = arith.constant 0 : i32
    %c0_i32_1 = arith.constant 0 : i32
    return %c0_i32, %c0_i32_0 : i32, i32
  }
  func.func @transform_3(%arg0: i32) -> (i32, i32) {
    %c0_i32 = arith.constant 0 : i32
    %c0_i32_0 = arith.constant 0 : i32
    return %arg0, %c0_i32 : i32, i32
  }
}

</mosaic_0001>

<llo_original>
// kernel: tpu_custom_call.1
$region0: #{tpu_custom_call.1}
  #allocation0 [shape = 'u32[]', space=smem, size = 0x4, offset = 0x4, fixed_abs, tag = 'smem constant byte address 0x4 - core index']
  #allocation1 [shape = 'u32[144,128]{1,0:T(1,128)}', space=vmem, size = 0x12000, scoped, tag = 'internal scratch']
  %s0 = inlined_call_operand.vmem [shape: f32[128,32], index: 0, kind: input, shape index: {}]
  %s1 = inlined_call_operand.vmem [shape: bf16[32,128], index: 1, kind: input, shape index: {}]
  %s2 = inlined_call_operand.vmem [shape: f32[1,128], index: 2, kind: input, shape index: {}]
  %s3 = inlined_call_operand.hbm [shape: f32[128,128], index: 3, kind: output, shape index: {}]
  %s4 = sld [smem:[#allocation0]]
  $region22: #{tpu_custom_call.1} parent=0
    _
  %s6 = ssub.s32 1, %s4
  %s7 = scalar_select 0, %s6, %s4
  $region1: #{tpu_custom_call.1} parent=0
    #allocation2 [shape = 'u8[65536]{0}', space=vmem, size = 0x10000, scoped, tag = 'output window, operand 0, single buffered']
    #allocation3 [shape = 's32[1]{0}', space=sflag, size = 0x4, scoped, tag = 'scoped memory for tpu_custom_call.1']
    %8 = vsyncpa [#allocation3], 0
    // Predicated region
    $region2: #{tpu_custom_call.1} parent=1 // pred_check
      _
    $region3: #{tpu_custom_call.1} parent=1 // pred_check_branch
      %10 = sbr.rel (0) target = $region5
    $region4: #{tpu_custom_call.1} parent=1 // pred_region
      _
    $region5: #{tpu_custom_call.1} parent=1 // pred_fallthru
      _
    // Predicated region
    $region6: #{tpu_custom_call.1} parent=1 // pred_check
      _
    $region7: #{tpu_custom_call.1} parent=1 // pred_check_branch
      %12 = sbr.rel (0) target = $region9
    $region8: #{tpu_custom_call.1} parent=1 // pred_region
      _
    $region9: #{tpu_custom_call.1} parent=1 // pred_fallthru
      _
    // Predicated region
    $region10: #{tpu_custom_call.1} parent=1 // pred_check
      _
    $region11: #{tpu_custom_call.1} parent=1 // pred_check_branch
      %14 = sbr.rel (0) target = $region13
    $region12: #{tpu_custom_call.1} parent=1 // pred_region
      _
    $region13: #{tpu_custom_call.1} parent=1 // pred_fallthru
      _
    %v16 = vld [vmem:[%s0] sm:$0xff]
    %v17 = vld [vmem:[%s0 + $0x8] sm:$0xff]
    %v18 = vld [vmem:[%s0 + $0x10] sm:$0xff]
    %v19 = vld [vmem:[%s0 + $0x18] sm:$0xff]
    %v20 = vld [vmem:[%s0 + $0x20] sm:$0xff]
    %v21 = vld [vmem:[%s0 + $0x28] sm:$0xff]
    %v22 = vld [vmem:[%s0 + $0x30] sm:$0xff]
    %v23 = vld [vmem:[%s0 + $0x38] sm:$0xff]
    %v24 = vld [vmem:[%s0 + $0x40] sm:$0xff]
    %v25 = vld [vmem:[%s0 + $0x48] sm:$0xff]
    %v26 = vld [vmem:[%s0 + $0x50] sm:$0xff]
    %v27 = vld [vmem:[%s0 + $0x58] sm:$0xff]
    %v28 = vld [vmem:[%s0 + $0x60] sm:$0xff]
    %v29 = vld [vmem:[%s0 + $0x68] sm:$0xff]
    %v30 = vld [vmem:[%s0 + $0x70] sm:$0xff]
    %v31 = vld [vmem:[%s0 + $0x78] sm:$0xff]
    %v32 = vpack.c.bf16 %v17, %v16
    %v33 = vpack.c.bf16 %v19, %v18
    %v34 = vpack.c.bf16 %v21, %v20
    %v35 = vpack.c.bf16 %v23, %v22
    %v36 = vpack.c.bf16 %v25, %v24
    %v37 = vpack.c.bf16 %v27, %v26
    %v38 = vpack.c.bf16 %v29, %v28
    %v39 = vpack.c.bf16 %v31, %v30
    %v40 = vld [vmem:[%s1] sm:$0xf]
    %v41 = vld [vmem:[%s1 + $0x4] sm:$0xf]
    %v42 = vld [vmem:[%s1 + $0x8] sm:$0xf]
    %v43 = vld [vmem:[%s1 + $0xc] sm:$0xf]
    %v44 = vld [vmem:[%s2] sm:$0x1]
    %v46 = vlaneseq
    %v47 = vshrl.u32 %v46, 7
    %v48 = vsub.s32 0, %v47
    %v49 = vrot.slane %v44, %v48
    %v55 = vunpack.c.l.b16 %v40
    %v56 = vunpack.c.l.b16 %v41
    %v57 = vunpack.c.l.b16 %v42
    %v58 = vunpack.c.l.b16 %v43
    %v59 = vpack.c.b16 %v56, %v55
    %v60 = vpack.c.b16 %v58, %v57
    %vm63 = vcmask 261120
    %v65 = vsel %vm63, %v32, 0
    %v68 = vsel %vm63, %v33, 0
    %v71 = vsel %vm63, %v34, 0
    %v74 = vsel %vm63, %v35, 0
    %v77 = vsel %vm63, %v36, 0
    %v80 = vsel %vm63, %v37, 0
    %v83 = vsel %vm63, %v38, 0
    %v86 = vsel %vm63, %v39, 0
    %88 = vmatprep.subr.bf16.mxu0 0
    %89 = vmatpush1.bf16.msra.mxu0 %v59
    %90 = vmatprep.subr.bf16.mxu0 0
    %91 = vmatpush1.bf16.msra.mxu0 %v60
    %92 = vmatprep.subr.bf16.mxu0 0
    %93 = vmatpush1.bf16.msra.mxu0 0
    %94 = vmatprep.subr.bf16.mxu0 0
    %95 = vmatpush1.bf16.msra.mxu0 0
    %96 = vmatprep.subr.bf16.mxu0 0
    %97 = vmatpush1.bf16.msra.mxu0 0
    %98 = vmatprep.subr.bf16.mxu0 0
    %99 = vmatpush1.bf16.msra.mxu0 0
    %100 = vmatprep.subr.bf16.mxu0 0
    %101 = vmatpush1.bf16.msra.mxu0 0
    %102 = vmatprep.subr.bf16.mxu0 0
    %103 = vmatpush1.bf16.msra.mxu0 0
    %104 = vmatprep.subr.bf16.mxu0 0
    %105 = vmatpush1.bf16.msra.mxu0 0
    %106 = vmatprep.subr.bf16.mxu0 0
    %107 = vmatpush1.bf16.msra.mxu0 0
    %108 = vmatprep.subr.bf16.mxu0 0
    %109 = vmatpush1.bf16.msra.mxu0 0
    %110 = vmatprep.subr.bf16.mxu0 0
    %111 = vmatpush1.bf16.msra.mxu0 0
    %112 = vmatprep.subr.bf16.mxu0 0
    %113 = vmatpush1.bf16.msra.mxu0 0
    %114 = vmatprep.subr.bf16.mxu0 0
    %115 = vmatpush1.bf16.msra.mxu0 0
    %116 = vmatprep.subr.bf16.mxu0 0
    %117 = vmatpush1.bf16.msra.mxu0 0
    %118 = vmatprep.subr.bf16.mxu0 0
    %119 = vmatpush1.bf16.msra.mxu0 0
    %120 = vmatprep.mubr.bf16.mxu0 0
    %121 = vmatmul.mubr.bf16.gmra.mrb[0].mxu0 %v65
    %v122 = vpop.f32.mrb[0].mxu0
    %v123 = vadd.f32 %v49, %v122
    %v124 = vpop.f32.mrb[0].mxu0
    %v125 = vpop.f32.mrb[0].mxu0
    %v126 = vadd.f32 %v49, %v125
    %v127 = vpop.f32.mrb[0].mxu0
    %128 = vmatprep.mubr.bf16.mxu0 0
    %129 = vmatmul.mubr.bf16.gmra.mrb[0].mxu0 %v68
    %v130 = vpop.f32.mrb[0].mxu0
    %v131 = vadd.f32 %v49, %v130
    %v132 = vpop.f32.mrb[0].mxu0
    %v133 = vpop.f32.mrb[0].mxu0
    %v134 = vadd.f32 %v49, %v133
    %v135 = vpop.f32.mrb[0].mxu0
    %136 = vmatprep.mubr.bf16.mxu0 0
    %137 = vmatmul.mubr.bf16.gmra.mrb[0].mxu0 %v71
    %v138 = vpop.f32.mrb[0].mxu0
    %v139 = vadd.f32 %v49, %v138
    %v140 = vpop.f32.mrb[0].mxu0
    %v141 = vpop.f32.mrb[0].mxu0
    %v142 = vadd.f32 %v49, %v141
    %v143 = vpop.f32.mrb[0].mxu0
    %144 = vmatprep.mubr.bf16.mxu0 0
    %145 = vmatmul.mubr.bf16.gmra.mrb[0].mxu0 %v74
    %v146 = vpop.f32.mrb[0].mxu0
    %v147 = vadd.f32 %v49, %v146
    %v148 = vpop.f32.mrb[0].mxu0
    %v149 = vpop.f32.mrb[0].mxu0
    %v150 = vadd.f32 %v49, %v149
    %v151 = vpop.f32.mrb[0].mxu0
    %152 = vmatprep.mubr.bf16.mxu0 0
    %153 = vmatmul.mubr.bf16.gmra.mrb[0].mxu0 %v77
    %v154 = vpop.f32.mrb[0].mxu0
    %v155 = vadd.f32 %v49, %v154
    %v156 = vpop.f32.mrb[0].mxu0
    %v157 = vpop.f32.mrb[0].mxu0
    %v158 = vadd.f32 %v49, %v157
    %v159 = vpop.f32.mrb[0].mxu0
    %160 = vmatprep.mubr.bf16.mxu0 0
    %161 = vmatmul.mubr.bf16.gmra.mrb[0].mxu0 %v80
    %v162 = vpop.f32.mrb[0].mxu0
    %v163 = vadd.f32 %v49, %v162
    %v164 = vpop.f32.mrb[0].mxu0
    %v165 = vpop.f32.mrb[0].mxu0
    %v166 = vadd.f32 %v49, %v165
    %v167 = vpop.f32.mrb[0].mxu0
    %168 = vmatprep.mubr.bf16.mxu0 0
    %169 = vmatmul.mubr.bf16.gmra.mrb[0].mxu0 %v83
    %v170 = vpop.f32.mrb[0].mxu0
    %v171 = vadd.f32 %v49, %v170
    %v172 = vpop.f32.mrb[0].mxu0
    %v173 = vpop.f32.mrb[0].mxu0
    %v174 = vadd.f32 %v49, %v173
    %v175 = vpop.f32.mrb[0].mxu0
    %176 = vmatprep.mubr.bf16.mxu0 0
    %177 = vmatmul.mubr.bf16.gmra.mrb[0].mxu0 %v86
    %v178 = vpop.f32.mrb[0].mxu0
    %v179 = vadd.f32 %v49, %v178
    %v180 = vpop.f32.mrb[0].mxu0
    %v181 = vpop.f32.mrb[0].mxu0
    %v182 = vadd.f32 %v49, %v181
    %v183 = vpop.f32.mrb[0].mxu0
    %184 = vdwg.mxu0
    %185 = vmax.xlane.f32.xlu0 %v123
    %v186 = vpop.xlane.xlu0 %185
    %187 = vmax.xlane.f32.xlu0 %v126
    %v188 = vpop.xlane.xlu0 %187
    %189 = vmax.xlane.f32.xlu0 %v131
    %v190 = vpop.xlane.xlu0 %189
    %191 = vmax.xlane.f32.xlu0 %v134
    %v192 = vpop.xlane.xlu0 %191
    %193 = vmax.xlane.f32.xlu0 %v139
    %v194 = vpop.xlane.xlu0 %193
    %195 = vmax.xlane.f32.xlu0 %v142
    %v196 = vpop.xlane.xlu0 %195
    %197 = vmax.xlane.f32.xlu0 %v147
    %v198 = vpop.xlane.xlu0 %197
    %199 = vmax.xlane.f32.xlu0 %v150
    %v200 = vpop.xlane.xlu0 %199
    %201 = vmax.xlane.f32.xlu0 %v155
    %v202 = vpop.xlane.xlu0 %201
    %203 = vmax.xlane.f32.xlu0 %v158
    %v204 = vpop.xlane.xlu0 %203
    %205 = vmax.xlane.f32.xlu0 %v163
    %v206 = vpop.xlane.xlu0 %205
    %207 = vmax.xlane.f32.xlu0 %v166
    %v208 = vpop.xlane.xlu0 %207
    %209 = vmax.xlane.f32.xlu0 %v171
    %v210 = vpop.xlane.xlu0 %209
    %211 = vmax.xlane.f32.xlu0 %v174
    %v212 = vpop.xlane.xlu0 %211
    %213 = vmax.xlane.f32.xlu0 %v179
    %v214 = vpop.xlane.xlu0 %213
    %215 = vmax.xlane.f32.xlu0 %v182
    %v216 = vpop.xlane.xlu0 %215
    %v217 = vsub.f32 %v123, %v186
    %v218 = vsub.f32 %v126, %v188
    %v219 = vsub.f32 %v131, %v190
    %v220 = vsub.f32 %v134, %v192
    %v221 = vsub.f32 %v139, %v194
    %v222 = vsub.f32 %v142, %v196
    %v223 = vsub.f32 %v147, %v198
    %v224 = vsub.f32 %v150, %v200
    %v225 = vsub.f32 %v155, %v202
    %v226 = vsub.f32 %v158, %v204
    %v227 = vsub.f32 %v163, %v206
    %v228 = vsub.f32 %v166, %v208
    %v229 = vsub.f32 %v171, %v210
    %v230 = vsub.f32 %v174, %v212
    %v231 = vsub.f32 %v179, %v214
    %v232 = vsub.f32 %v182, %v216
    %v233 = vmul.f32 %v217, 1.442695
    %v234 = vpow.pop %v233
    %v235 = vmul.f32 %v218, 1.442695
    %v236 = vpow.pop %v235
    %v237 = vmul.f32 %v219, 1.442695
    %v238 = vpow.pop %v237
    %v239 = vmul.f32 %v220, 1.442695
    %v240 = vpow.pop %v239
    %v241 = vmul.f32 %v221, 1.442695
    %v242 = vpow.pop %v241
    %v243 = vmul.f32 %v222, 1.442695
    %v244 = vpow.pop %v243
    %v245 = vmul.f32 %v223, 1.442695
    %v246 = vpow.pop %v245
    %v247 = vmul.f32 %v224, 1.442695
    %v248 = vpow.pop %v247
    %v249 = vmul.f32 %v225, 1.442695
    %v250 = vpow.pop %v249
    %v251 = vmul.f32 %v226, 1.442695
    %v252 = vpow.pop %v251
    %v253 = vmul.f32 %v227, 1.442695
    %v254 = vpow.pop %v253
    %v255 = vmul.f32 %v228, 1.442695
    %v256 = vpow.pop %v255
    %v257 = vmul.f32 %v229, 1.442695
    %v258 = vpow.pop %v257
    %v259 = vmul.f32 %v230, 1.442695
    %v260 = vpow.pop %v259
    %v261 = vmul.f32 %v231, 1.442695
    %v262 = vpow.pop %v261
    %v263 = vmul.f32 %v232, 1.442695
    %v264 = vpow.pop %v263
    %265 = vadd.xlane.f32.xlu0 %v234
    %v266 = vpop.xlane.xlu0 %265
    %267 = vadd.xlane.f32.xlu0 %v236
    %v268 = vpop.xlane.xlu0 %267
    %269 = vadd.xlane.f32.xlu0 %v238
    %v270 = vpop.xlane.xlu0 %269
    %271 = vadd.xlane.f32.xlu0 %v240
    %v272 = vpop.xlane.xlu0 %271
    %273 = vadd.xlane.f32.xlu0 %v242
    %v274 = vpop.xlane.xlu0 %273
    %275 = vadd.xlane.f32.xlu0 %v244
    %v276 = vpop.xlane.xlu0 %275
    %277 = vadd.xlane.f32.xlu0 %v246
    %v278 = vpop.xlane.xlu0 %277
    %279 = vadd.xlane.f32.xlu0 %v248
    %v280 = vpop.xlane.xlu0 %279
    %281 = vadd.xlane.f32.xlu0 %v250
    %v282 = vpop.xlane.xlu0 %281
    %283 = vadd.xlane.f32.xlu0 %v252
    %v284 = vpop.xlane.xlu0 %283
    %285 = vadd.xlane.f32.xlu0 %v254
    %v286 = vpop.xlane.xlu0 %285
    %287 = vadd.xlane.f32.xlu0 %v256
    %v288 = vpop.xlane.xlu0 %287
    %289 = vadd.xlane.f32.xlu0 %v258
    %v290 = vpop.xlane.xlu0 %289
    %291 = vadd.xlane.f32.xlu0 %v260
    %v292 = vpop.xlane.xlu0 %291
    %293 = vadd.xlane.f32.xlu0 %v262
    %v294 = vpop.xlane.xlu0 %293
    %295 = vadd.xlane.f32.xlu0 %v264
    %v296 = vpop.xlane.xlu0 %295
    %v297 = vlog2.pop %v266
    %v298 = vmul.f32 %v297, 0.6931472
    %v299 = vlog2.pop %v268
    %v300 = vmul.f32 %v299, 0.6931472
    %v301 = vlog2.pop %v270
    %v302 = vmul.f32 %v301, 0.6931472
    %v303 = vlog2.pop %v272
    %v304 = vmul.f32 %v303, 0.6931472
    %v305 = vlog2.pop %v274
    %v306 = vmul.f32 %v305, 0.6931472
    %v307 = vlog2.pop %v276
    %v308 = vmul.f32 %v307, 0.6931472
    %v309 = vlog2.pop %v278
    %v310 = vmul.f32 %v309, 0.6931472
    %v311 = vlog2.pop %v280
    %v312 = vmul.f32 %v311, 0.6931472
    %v313 = vlog2.pop %v282
    %v314 = vmul.f32 %v313, 0.6931472
    %v315 = vlog2.pop %v284
    %v316 = vmul.f32 %v315, 0.6931472
    %v317 = vlog2.pop %v286
    %v318 = vmul.f32 %v317, 0.6931472
    %v319 = vlog2.pop %v288
    %v320 = vmul.f32 %v319, 0.6931472
    %v321 = vlog2.pop %v290
    %v322 = vmul.f32 %v321, 0.6931472
    %v323 = vlog2.pop %v292
    %v324 = vmul.f32 %v323, 0.6931472
    %v325 = vlog2.pop %v294
    %v326 = vmul.f32 %v325, 0.6931472
    %v327 = vlog2.pop %v296
    %v328 = vmul.f32 %v327, 0.6931472
    %v329 = vsub.f32 %v217, %v298
    %v330 = vsub.f32 %v218, %v300
    %v331 = vsub.f32 %v219, %v302
    %v332 = vsub.f32 %v220, %v304
    %v333 = vsub.f32 %v221, %v306
    %v334 = vsub.f32 %v222, %v308
    %v335 = vsub.f32 %v223, %v310
    %v336 = vsub.f32 %v224, %v312
    %v337 = vsub.f32 %v225, %v314
    %v338 = vsub.f32 %v226, %v316
    %v339 = vsub.f32 %v227, %v318
    %v340 = vsub.f32 %v228, %v320
    %v341 = vsub.f32 %v229, %v322
    %v342 = vsub.f32 %v230, %v324
    %v343 = vsub.f32 %v231, %v326
    %v344 = vsub.f32 %v232, %v328
    %345 = vst [vmem:[#allocation2] sm:$0xff] %v329
    %346 = vst [vmem:[#allocation2 + $0x8] sm:$0xff] %v330
    %347 = vst [vmem:[#allocation2 + $0x10] sm:$0xff] %v331
    %348 = vst [vmem:[#allocation2 + $0x18] sm:$0xff] %v332
    %349 = vst [vmem:[#allocation2 + $0x20] sm:$0xff] %v333
    %350 = vst [vmem:[#allocation2 + $0x28] sm:$0xff] %v334
    %351 = vst [vmem:[#allocation2 + $0x30] sm:$0xff] %v335
    %352 = vst [vmem:[#allocation2 + $0x38] sm:$0xff] %v336
    %353 = vst [vmem:[#allocation2 + $0x40] sm:$0xff] %v337
    %354 = vst [vmem:[#allocation2 + $0x48] sm:$0xff] %v338
    %355 = vst [vmem:[#allocation2 + $0x50] sm:$0xff] %v339
    %356 = vst [vmem:[#allocation2 + $0x58] sm:$0xff] %v340
    %357 = vst [vmem:[#allocation2 + $0x60] sm:$0xff] %v341
    %358 = vst [vmem:[#allocation2 + $0x68] sm:$0xff] %v342
    %359 = vst [vmem:[#allocation2 + $0x70] sm:$0xff] %v343
    %360 = vst [vmem:[#allocation2 + $0x78] sm:$0xff] %v344
    // Predicated region
    $region14: #{tpu_custom_call.1} parent=1 // pred_check
      _
    $region15: #{tpu_custom_call.1} parent=1 // pred_check_branch
      %362 = sbr.rel (0) target = $region17
    $region16: #{tpu_custom_call.1} parent=1 // pred_region
      %s364 = ssub.s32 2048, 2048
      %365 = vsyncadd [#allocation3], %s364
      %s366 = sshll.u32 [#allocation2], 4
      %s367 = int_to_ptr.vmem [resolvable:$true] %s366
      %372 = dma.vmem_to_hbm [thread:$0]  %s367, 2048, %s3, [#allocation3], 128, 128, 8
    $region17: #{tpu_custom_call.1} parent=1 // pred_fallthru
      _
    // Predicated region
    $region18: #{tpu_custom_call.1} parent=1 // pred_check
      _
    $region19: #{tpu_custom_call.1} parent=1 // pred_check_branch
      %374 = sbr.rel (0) target = $region21
    $region20: #{tpu_custom_call.1} parent=1 // pred_region
      %375 = dma.done [#allocation3], 2048
    $region21: #{tpu_custom_call.1} parent=1 // pred_fallthru
      _
    %376 = vsyncpa [#allocation3], 1

</llo_original>
